<compile_context>
chip_gen: v5e
topology: v5e:2x2
jax: 0.10.0
libtpu: 0.0.40
codegen_flags: <defaults>
</compile_context>

<pallas_src>
import functools

import jax
import jax.numpy as jnp
from jax.experimental import pallas as pl
from jax.experimental.pallas import tpu as pltpu

LANE = 128


def _round_up(n, m):
    return ((n + m - 1) // m) * m


def actor_critic_kernel(x_ref, w1_ref, b1_ref, wh_ref, bh_ref, out_ref, *, actor_dim):
    """Fused forward:
         h      = relu(x @ W1 + b1)                        (ActorCritic.forward)
         heads  = h @ [Wa | Wc | 0pad] + [ba | bc | 0pad]  (both heads, one matmul)
         out[:, :actor_dim]            = softmax(heads[:, :actor_dim], axis=1)
         out[:, actor_dim]             = critic value
         out[:, actor_dim+1:]          = 0 (padding, sliced off in wrapper)
    """
    # fc1 + ReLU. Streamed operands go to the MXU as bf16; accumulate in f32.
    x = x_ref[...].astype(jnp.bfloat16)
    h = jnp.dot(x, w1_ref[...], preferred_element_type=jnp.float32) + b1_ref[...]
    h = jnp.maximum(h, 0.0)

    # Fused actor+critic heads: one lane-dense bf16 MXU pass, f32 accumulate.
    heads = jnp.dot(h.astype(jnp.bfloat16), wh_ref[...],
                    preferred_element_type=jnp.float32) + bh_ref[...]

    # Softmax over the actor lanes only, done full-width via a lane mask so the
    # whole epilogue stays lane-dense (no tiny slices / masked stores).
    lane = jax.lax.broadcasted_iota(jnp.int32, heads.shape, 1)
    is_actor = lane < actor_dim
    masked = jnp.where(is_actor, heads, -jnp.inf)
    m = jnp.max(masked, axis=1, keepdims=True)
    e = jnp.exp(masked - m)                    # padded lanes -> exp(-inf) = 0
    denom = jnp.sum(e, axis=1, keepdims=True)
    probs = e / denom                          # exact divide (approx recip broke sum-to-1)

    # Single lane-dense output slab: actor probs in lanes [0:actor_dim],
    # critic value (then zero padding) in the remaining lanes.
    out_ref[...] = jnp.where(is_actor, probs, heads).astype(out_ref.dtype)


def prepare_params(w1, b1, wa, ba, wc, bc):
    """One-time (init-time) weight fusion / padding / bf16 cast.

    Hoisted out of the per-call path so the hot forward is a single dispatch.
    """
    H = w1.shape[1]
    A = wa.shape[1]
    C = wc.shape[1]
    head_pad = _round_up(max(A + C, LANE), LANE)   # fused-head / output slab width

    f32 = jnp.float32
    bf16 = jnp.bfloat16

    wh = (jnp.zeros((H, head_pad), f32)
          .at[:, :A].set(wa.astype(f32))
          .at[:, A:A + C].set(wc.astype(f32)))
    bh = (jnp.zeros((1, head_pad), f32)
          .at[:, :A].set(ba.reshape(1, A).astype(f32))
          .at[:, A:A + C].set(bc.reshape(1, C).astype(f32)))

    params = dict(
        w1=w1.astype(bf16),                 # (K, H)  streamed -> bf16
        b1=b1.reshape(1, H).astype(f32),    # (1, H)  bias stays f32
        wh=wh.astype(bf16),                 # (H, head_pad) streamed -> bf16
        bh=bh,                              # (1, head_pad) f32
    )
    return params, A, C


@functools.partial(jax.jit, static_argnames=("actor_dim", "critic_dim", "block_b"))
def actor_critic_forward(x, w1, b1, wh, bh, *, actor_dim, critic_dim, block_b=512):
    """Returns (probs, value) == (compute_actor(x, dim=1), compute_critic(x)).

    The hidden activation (module.forward) is computed inside the kernel but
    not written back to HBM — it is recomputable and unused downstream.
    """
    B, K = x.shape
    H = w1.shape[1]
    head_pad = wh.shape[1]

    # Batch tile: multiple of 8, <= block_b, and capped near ceil(B/2) so large
    # batches always yield >=2 grid steps (keeps both v7x TensorCores busy).
    tb = min(block_b, _round_up(max((B + 1) // 2, 8), 8))
    grid = (pl.cdiv(B, tb),)   # partial last tile handled by Pallas (no pad copy)

    out = pl.pallas_call(
        functools.partial(actor_critic_kernel, actor_dim=actor_dim),
        out_shape=jax.ShapeDtypeStruct((B, head_pad), jnp.float32),
        grid=grid,
        in_specs=[
            pl.BlockSpec((tb, K), lambda i: (i, 0)),        # x tile (real K, no lane pad)
            pl.BlockSpec((K, H), lambda i: (0, 0)),         # W1 bf16 (grid-invariant)
            pl.BlockSpec((1, H), lambda i: (0, 0)),         # b1
            pl.BlockSpec((H, head_pad), lambda i: (0, 0)),  # fused head weights (bf16)
            pl.BlockSpec((1, head_pad), lambda i: (0, 0)),  # fused head bias
        ],
        out_specs=pl.BlockSpec((tb, head_pad), lambda i: (i, 0)),
        compiler_params=pltpu.CompilerParams(
            dimension_semantics=("parallel",),
        ),
    )(x, w1, b1, wh, bh)

    probs = out[:, :actor_dim]
    value = out[:, actor_dim:actor_dim + critic_dim]
    return probs, value


def init_linear(key, in_features, out_features):
    """PyTorch-style Linear init U(-1/sqrt(in), 1/sqrt(in)); weight pre-transposed
    to (in_features, out_features)."""
    kw, kb = jax.random.split(key)
    bound = 1.0 / jnp.sqrt(jnp.float32(in_features))
    w = jax.random.uniform(kw, (in_features, out_features), jnp.float32, -bound, bound)
    b = jax.random.uniform(kb, (1, out_features), jnp.float32, -bound, bound)
    return w, b


if __name__ == "__main__":
    # TODO(synk): training-side methods (process_memory*, start_training, Adam
    # optimizer) are host-side bookkeeping / autograd and are not kernelized.
    input_dim, hidden_dim, actor_dim, critic_dim = 4, 128, 2, 1
    batch = 8

    key = jax.random.PRNGKey(0)
    kx, k1, k2, k3 = jax.random.split(key, 4)

    x = jax.random.normal(kx, (batch, input_dim), jnp.float32)
    w1, b1 = init_linear(k1, input_dim, hidden_dim)
    wa, ba = init_linear(k2, hidden_dim, actor_dim)
    wc, bc = init_linear(k3, hidden_dim, critic_dim)

    params, A, C = prepare_params(w1, b1, wa, ba, wc, bc)   # one-time, out of hot path

    probs, value = actor_critic_forward(
        x, params["w1"], params["b1"], params["wh"], params["bh"],
        actor_dim=A, critic_dim=C)
    jax.block_until_ready((probs, value))

    # Reference in plain f32 JAX (same math as the PyTorch module).
    h_ref = jnp.maximum(x @ w1 + b1, 0.0)
    probs_ref = jax.nn.softmax(h_ref @ wa + ba, axis=1)
    value_ref = h_ref @ wc + bc

    # Tolerances account for bf16-streamed matmul operands (f32 accumulation,
    # f32 epilogue). The softmax normalization itself uses an exact divide.
    assert probs.shape == (batch, actor_dim)
    assert value.shape == (batch, critic_dim)
    assert jnp.allclose(probs, probs_ref, atol=2e-2, rtol=2e-2), "actor probs mismatch"
    assert jnp.allclose(value, value_ref, atol=3e-2, rtol=3e-2), "critic value mismatch"
    assert jnp.allclose(jnp.sum(probs, axis=1), 1.0, atol=1e-3), "softmax not normalized"

    print("KERNEL_OK")
</pallas_src>

<mosaic_0001>
module attributes {stable_mosaic.version = 11 : i64} {
  func.func @actor_critic_kernel(%arg0: i32, %arg1: memref<8x4xf32, #tpu.memory_space<vmem>>, %arg2: memref<4x128xbf16, #tpu.memory_space<vmem>>, %arg3: memref<1x128xf32, #tpu.memory_space<vmem>>, %arg4: memref<128x128xbf16, #tpu.memory_space<vmem>>, %arg5: memref<1x128xf32, #tpu.memory_space<vmem>>, %arg6: memref<8x128xf32, #tpu.memory_space<vmem>>) attributes {dimension_semantics = [#tpu.dimension_semantics<parallel>], iteration_bounds = array<i64: 1>, scalar_prefetch = 0 : i64, scratch_operands = 0 : i64, tpu.core_type = #tpu.core_type<tc>, window_params = [{transform_indices = @transform_0, window_bounds = array<i64: 8, 4>}, {pipeline_mode = #tpu.pipeline_mode<synchronous>, transform_indices = @transform_1, window_bounds = array<i64: 4, 128>}, {pipeline_mode = #tpu.pipeline_mode<synchronous>, transform_indices = @transform_2, window_bounds = array<i64: 1, 128>}, {pipeline_mode = #tpu.pipeline_mode<synchronous>, transform_indices = @transform_3, window_bounds = array<i64: 128, 128>}, {pipeline_mode = #tpu.pipeline_mode<synchronous>, transform_indices = @transform_4, window_bounds = array<i64: 1, 128>}, {transform_indices = @transform_5, window_bounds = array<i64: 8, 128>}]} {
    %c0 = arith.constant 0 : index
    %c0_0 = arith.constant 0 : index
    %0 = vector.load %arg1[%c0, %c0_0] : memref<8x4xf32, #tpu.memory_space<vmem>>, vector<8x4xf32>
    %1 = arith.truncf %0 : vector<8x4xf32> to vector<8x4xbf16>
    %c0_1 = arith.constant 0 : index
    %c0_2 = arith.constant 0 : index
    %2 = vector.load %arg2[%c0_1, %c0_2] : memref<4x128xbf16, #tpu.memory_space<vmem>>, vector<4x128xbf16>
    %cst = arith.constant dense<0.000000e+00> : vector<8x128xf32>
    %3 = tpu.matmul %1, %2, %cst {dimension_numbers = #tpu.dot_dimension_numbers<[1], [0], [0], [1], [0, 0, 1, 1], [], []>} : vector<8x4xbf16>, vector<4x128xbf16>, vector<8x128xf32> -> vector<8x128xf32>
    %c0_3 = arith.constant 0 : index
    %c0_4 = arith.constant 0 : index
    %4 = vector.load %arg3[%c0_3, %c0_4] : memref<1x128xf32, #tpu.memory_space<vmem>>, vector<1x128xf32>
    %5 = vector.broadcast %4 : vector<1x128xf32> to vector<8x128xf32>
    %6 = arith.addf %3, %5 : vector<8x128xf32>
    %cst_5 = arith.constant 0.000000e+00 : f32
    %7 = vector.broadcast %cst_5 : f32 to vector<8x128xf32>
    %8 = arith.maximumf %6, %7 : vector<8x128xf32>
    %9 = arith.truncf %8 : vector<8x128xf32> to vector<8x128xbf16>
    %c0_6 = arith.constant 0 : index
    %c0_7 = arith.constant 0 : index
    %10 = vector.load %arg4[%c0_6, %c0_7] : memref<128x128xbf16, #tpu.memory_space<vmem>>, vector<128x128xbf16>
    %cst_8 = arith.constant dense<0.000000e+00> : vector<8x128xf32>
    %11 = tpu.matmul %9, %10, %cst_8 {dimension_numbers = #tpu.dot_dimension_numbers<[1], [0], [0], [1], [0, 0, 1, 1], [], []>} : vector<8x128xbf16>, vector<128x128xbf16>, vector<8x128xf32> -> vector<8x128xf32>
    %c0_9 = arith.constant 0 : index
    %c0_10 = arith.constant 0 : index
    %12 = vector.load %arg5[%c0_9, %c0_10] : memref<1x128xf32, #tpu.memory_space<vmem>>, vector<1x128xf32>
    %13 = vector.broadcast %12 : vector<1x128xf32> to vector<8x128xf32>
    %14 = arith.addf %11, %13 : vector<8x128xf32>
    %15 = tpu.iota {dimensions = array<i32: 1>} : vector<8x128xi32>
    %c2_i32 = arith.constant 2 : i32
    %16 = vector.broadcast %c2_i32 : i32 to vector<8x128xi32>
    %17 = arith.cmpi slt, %15, %16 : vector<8x128xi32>
    %cst_11 = arith.constant 0xFF800000 : f32
    %18 = vector.broadcast %cst_11 : f32 to vector<8x128xf32>
    %19 = arith.select %17, %14, %18 : vector<8x128xi1>, vector<8x128xf32>
    %cst_12 = arith.constant dense<0xFF800000> : vector<8xf32>
    %20 = vector.multi_reduction <maximumf>, %19, %cst_12 [1] : vector<8x128xf32> to vector<8xf32>
    %21 = vector.shape_cast %20 : vector<8xf32> to vector<8x1xf32>
    %22 = vector.broadcast %21 : vector<8x1xf32> to vector<8x128xf32>
    %23 = arith.subf %19, %22 : vector<8x128xf32>
    %24 = math.exp %23 : vector<8x128xf32>
    %cst_13 = arith.constant dense<0.000000e+00> : vector<8xf32>
    %25 = vector.multi_reduction <add>, %24, %cst_13 [1] : vector<8x128xf32> to vector<8xf32>
    %26 = vector.shape_cast %25 : vector<8xf32> to vector<8x1xf32>
    %27 = vector.broadcast %26 : vector<8x1xf32> to vector<8x128xf32>
    %28 = arith.divf %24, %27 : vector<8x128xf32>
    %29 = arith.select %17, %28, %14 : vector<8x128xi1>, vector<8x128xf32>
    %c0_14 = arith.constant 0 : index
    %c0_15 = arith.constant 0 : index
    %30 = vector.load %arg6[%c0_14, %c0_15] : memref<8x128xf32, #tpu.memory_space<vmem>>, vector<8x128xf32>
    tpu.vector_store %arg6[%c0_14, %c0_15], %29 {strides = array<i32>} : memref<8x128xf32, #tpu.memory_space<vmem>>, vector<8x128xf32>,
    return
  }
  func.func @transform_0(%arg0: i32) -> (i32, i32) {
    %c0_i32 = arith.constant 0 : i32
    %c0_i32_0 = arith.constant 0 : i32
    return %arg0, %c0_i32 : i32, i32
  }
  func.func @transform_1(%arg0: i32) -> (i32, i32) {
    %c0_i32 = arith.constant 0 : i32
    %c0_i32_0 = arith.constant 0 : i32
    %c0_i32_1 = arith.constant 0 : i32
    return %c0_i32, %c0_i32_0 : i32, i32
  }
  func.func @transform_2(%arg0: i32) -> (i32, i32) {
    %c0_i32 = arith.constant 0 : i32
    %c0_i32_0 = arith.constant 0 : i32
    %c0_i32_1 = arith.constant 0 : i32
    return %c0_i32, %c0_i32_0 : i32, i32
  }
  func.func @transform_3(%arg0: i32) -> (i32, i32) {
    %c0_i32 = arith.constant 0 : i32
    %c0_i32_0 = arith.constant 0 : i32
    %c0_i32_1 = arith.constant 0 : i32
    return %c0_i32, %c0_i32_0 : i32, i32
  }
  func.func @transform_4(%arg0: i32) -> (i32, i32) {
    %c0_i32 = arith.constant 0 : i32
    %c0_i32_0 = arith.constant 0 : i32
    %c0_i32_1 = arith.constant 0 : i32
    return %c0_i32, %c0_i32_0 : i32, i32
  }
  func.func @transform_5(%arg0: i32) -> (i32, i32) {
    %c0_i32 = arith.constant 0 : i32
    %c0_i32_0 = arith.constant 0 : i32
    return %arg0, %c0_i32 : i32, i32
  }
}

</mosaic_0001>

<llo_original>
// kernel: actor_critic_forward.1
$region0: #{actor_critic_forward.1}
  #allocation0 [shape = 'u32[]', space=smem, size = 0x4, offset = 0x4, fixed_abs, tag = 'smem constant byte address 0x4 - core index']
  #allocation1 [shape = 'u32[72,128]{1,0:T(1,128)}', space=vmem, size = 0x9000, scoped, tag = 'internal scratch']
  %s0 = inlined_call_operand.vmem [shape: f32[8,4], index: 0, kind: input, shape index: {}]
  %s1 = inlined_call_operand.vmem [shape: bf16[4,128], index: 1, kind: input, shape index: {}]
  %s2 = inlined_call_operand.vmem [shape: f32[1,128], index: 2, kind: input, shape index: {}]
  %s3 = inlined_call_operand.hbm [shape: bf16[128,128], index: 3, kind: input, shape index: {}]
  %s4 = inlined_call_operand.vmem [shape: f32[1,128], index: 4, kind: input, shape index: {}]
  %s5 = inlined_call_operand.vmem [shape: f32[8,128], index: 5, kind: output, shape index: {}]
  %s6 = sld [smem:[#allocation0]]
  $region34: #{actor_critic_forward.1} parent=0
    _
  %s8 = ssub.s32 1, %s6
  %s9 = scalar_select 0, %s8, %s6
  $region1: #{actor_critic_forward.1} parent=0
    #allocation2 [shape = 'u8[32768]{0}', space=vmem, size = 0x8000, scoped, tag = 'input window, operand 3, single buffered']
    #allocation3 [shape = 's32[1]{0}', space=sflag, size = 0x4, scoped, tag = 'scoped memory for actor_critic_forward.1']
    %10 = vsyncpa [#allocation3], 0
    // Predicated region
    $region2: #{actor_critic_forward.1} parent=1 // pred_check
      _
    $region3: #{actor_critic_forward.1} parent=1 // pred_check_branch
      %12 = sbr.rel (0) target = $region5
    $region4: #{actor_critic_forward.1} parent=1 // pred_region
      _
    $region5: #{actor_critic_forward.1} parent=1 // pred_fallthru
      _
    // Predicated region
    $region6: #{actor_critic_forward.1} parent=1 // pred_check
      _
    $region7: #{actor_critic_forward.1} parent=1 // pred_check_branch
      %14 = sbr.rel (0) target = $region9
    $region8: #{actor_critic_forward.1} parent=1 // pred_region
      _
    $region9: #{actor_critic_forward.1} parent=1 // pred_fallthru
      _
    // Predicated region
    $region10: #{actor_critic_forward.1} parent=1 // pred_check
      _
    $region11: #{actor_critic_forward.1} parent=1 // pred_check_branch
      %16 = sbr.rel (0) target = $region13
    $region12: #{actor_critic_forward.1} parent=1 // pred_region
      _
    $region13: #{actor_critic_forward.1} parent=1 // pred_fallthru
      _
    // Predicated region
    $region14: #{actor_critic_forward.1} parent=1 // pred_check
      _
    $region15: #{actor_critic_forward.1} parent=1 // pred_check_branch
      %18 = sbr.rel (0) target = $region17
    $region16: #{actor_critic_forward.1} parent=1 // pred_region
      %20 = vsyncadd [#allocation3], 0
      %s21 = sshll.u32 %s3, 4
      %s22 = int_to_ptr.hbm [resolvable:$true] %s21
      %s23 = sshll.u32 [#allocation2], 4
      %s24 = int_to_ptr.vmem [resolvable:$true] %s23
      %29 = dma.hbm_to_vmem [thread:$0]  %s22, 1024, %s24, [#allocation3], 64, 64, 4
    $region17: #{actor_critic_forward.1} parent=1 // pred_fallthru
      _
    // Predicated region
    $region18: #{actor_critic_forward.1} parent=1 // pred_check
      _
    $region19: #{actor_critic_forward.1} parent=1 // pred_check_branch
      %31 = sbr.rel (0) target = $region21
    $region20: #{actor_critic_forward.1} parent=1 // pred_region
      _
    $region21: #{actor_critic_forward.1} parent=1 // pred_fallthru
      _
    // Predicated region
    $region22: #{actor_critic_forward.1} parent=1 // pred_check
      _
    $region23: #{actor_critic_forward.1} parent=1 // pred_check_branch
      %33 = sbr.rel (0) target = $region25
    $region24: #{actor_critic_forward.1} parent=1 // pred_region
      %35 = dma.done [#allocation3], 1024
    $region25: #{actor_critic_forward.1} parent=1 // pred_fallthru
      _
    %v37 = vld [vmem:[%s0] sm:$0xff]
    %v38 = vpack.c.bf16 %v37, %v37
    %v39 = vld [vmem:[%s1] sm:$0x3]
    %v40 = vld [vmem:[%s2] sm:$0x1]
    %v42 = vperm.slane %v40, 0
    %vm44 = vcmask 31744
    %v46 = vsel %vm44, %v38, 0
    %vm48 = vcmask 1041408
    %v50 = vsel %vm48, %v39, 0
    %52 = vmatpush.bf16.msra.mxu0 0
    %53 = vmatpush.bf16.msra.mxu0 0
    %54 = vmatpush.bf16.msra.mxu0 0
    %55 = vmatpush.bf16.msra.mxu0 0
    %56 = vmatpush.bf16.msra.mxu0 0
    %57 = vmatpush.bf16.msra.mxu0 0
    %58 = vmatpush.bf16.msra.mxu0 0
    %59 = vmatpush.bf16.msra.mxu0 %v50
    %60 = vmatmul.bf16.gmra.mxu0 %v46
    %v61 = vpop.f32.mrf.mxu0
    %v62 = vadd.f32 %v42, %v61
    %v63 = vpop.f32.mrf.mxu0
    %64 = vdwg.mxu0
    %v65 = vmax.f32 %v62, 0.0
    %v66 = vpack.c.bf16 %v65, %v65
    %v67 = vld [vmem:[#allocation2] sm:$0xf]
    %v68 = vld [vmem:[#allocation2 + $0x4] sm:$0xf]
    %v69 = vld [vmem:[#allocation2 + $0x8] sm:$0xf]
    %v70 = vld [vmem:[#allocation2 + $0xc] sm:$0xf]
    %v71 = vld [vmem:[#allocation2 + $0x10] sm:$0xf]
    %v72 = vld [vmem:[#allocation2 + $0x14] sm:$0xf]
    %v73 = vld [vmem:[#allocation2 + $0x18] sm:$0xf]
    %v74 = vld [vmem:[#allocation2 + $0x1c] sm:$0xf]
    %v75 = vld [vmem:[#allocation2 + $0x20] sm:$0xf]
    %v76 = vld [vmem:[#allocation2 + $0x24] sm:$0xf]
    %v77 = vld [vmem:[#allocation2 + $0x28] sm:$0xf]
    %v78 = vld [vmem:[#allocation2 + $0x2c] sm:$0xf]
    %v79 = vld [vmem:[#allocation2 + $0x30] sm:$0xf]
    %v80 = vld [vmem:[#allocation2 + $0x34] sm:$0xf]
    %v81 = vld [vmem:[#allocation2 + $0x38] sm:$0xf]
    %v82 = vld [vmem:[#allocation2 + $0x3c] sm:$0xf]
    %v83 = vld [vmem:[%s4] sm:$0x1]
    %v85 = vperm.slane %v83, 0
    %v103 = vunpack.c.l.b16 %v67
    %v104 = vunpack.c.l.b16 %v68
    %v105 = vunpack.c.l.b16 %v69
    %v106 = vunpack.c.l.b16 %v70
    %v107 = vunpack.c.l.b16 %v71
    %v108 = vunpack.c.l.b16 %v72
    %v109 = vunpack.c.l.b16 %v73
    %v110 = vunpack.c.l.b16 %v74
    %v111 = vunpack.c.l.b16 %v75
    %v112 = vunpack.c.l.b16 %v76
    %v113 = vunpack.c.l.b16 %v77
    %v114 = vunpack.c.l.b16 %v78
    %v115 = vunpack.c.l.b16 %v79
    %v116 = vunpack.c.l.b16 %v80
    %v117 = vunpack.c.l.b16 %v81
    %v118 = vunpack.c.l.b16 %v82
    %v119 = vpack.c.b16 %v104, %v103
    %v120 = vpack.c.b16 %v106, %v105
    %v121 = vpack.c.b16 %v108, %v107
    %v122 = vpack.c.b16 %v110, %v109
    %v123 = vpack.c.b16 %v112, %v111
    %v124 = vpack.c.b16 %v114, %v113
    %v125 = vpack.c.b16 %v116, %v115
    %v126 = vpack.c.b16 %v118, %v117
    %135 = vmatpush.bf16.msra.mxu0 %v126
    %136 = vmatpush.bf16.msra.mxu0 %v125
    %137 = vmatpush.bf16.msra.mxu0 %v124
    %138 = vmatpush.bf16.msra.mxu0 %v123
    %139 = vmatpush.bf16.msra.mxu0 %v122
    %140 = vmatpush.bf16.msra.mxu0 %v121
    %141 = vmatpush.bf16.msra.mxu0 %v120
    %142 = vmatpush.bf16.msra.mxu0 %v119
    %143 = vmatmul.bf16.gmra.mxu0 %v66
    %v144 = vpop.f32.mrf.mxu0
    %v145 = vadd.f32 %v85, %v144
    %v146 = vpop.f32.mrf.mxu0
    %147 = vdwg.mxu0
    %v148 = vlaneseq
    %v149 = vand.u32 %v148, 127
    %vm150 = vcmp.lt.s32.totalorder %v149, 2
    %v151 = vsel %vm150, %v145, -inf
    %152 = vmax.xlane.f32.xlu0 %v151
    %v153 = vpop.xlane.xlu0 %152
    %v154 = vsub.f32 %v151, %v153
    %v155 = vmul.f32 %v154, 1.442695
    %v156 = vpow.pop %v155
    %157 = vadd.xlane.f32.xlu0 %v156
    %v158 = vpop.xlane.xlu0 %157
    %v159 = vrcp.pop %v158
    %v160 = vmul.f32 %v158, %v159
    %v161 = vsub.f32 1.0, %v160
    %v162 = vmul.f32 %v159, %v161
    %v163 = vadd.f32 %v159, %v162
    %vm164 = vweird.f32 %v158
    %vm165 = vweird.f32 %v159
    %vm166 = vmor %vm164, %vm165
    %v167 = vsel %vm166, %v159, %v163
    %v168 = vand.u32 2147483647, %v158
    %vm169 = vcmp.eq.f32.partialorder %v168, 8.507059e+37
    %v170 = vand.u32 %v158, 2147483648
    %v171 = vor.u32 1.1754944e-38, %v170
    %v172 = vsel %vm169, %v171, %v167
    %v173 = vmul.f32 %v156, %v172
    %v174 = vsel %vm150, %v173, %v145
    %175 = vst [vmem:[%s5] sm:$0xff] %v174
    // Predicated region
    $region26: #{actor_critic_forward.1} parent=1 // pred_check
      _
    $region27: #{actor_critic_forward.1} parent=1 // pred_check_branch
      %177 = sbr.rel (0) target = $region29
    $region28: #{actor_critic_forward.1} parent=1 // pred_region
      _
    $region29: #{actor_critic_forward.1} parent=1 // pred_fallthru
      _
    // Predicated region
    $region30: #{actor_critic_forward.1} parent=1 // pred_check
      _
    $region31: #{actor_critic_forward.1} parent=1 // pred_check_branch
      %179 = sbr.rel (0) target = $region33
    $region32: #{actor_critic_forward.1} parent=1 // pred_region
      _
    $region33: #{actor_critic_forward.1} parent=1 // pred_fallthru
      _
    %180 = vsyncpa [#allocation3], 1

</llo_original>
